<compile_context>
chip_gen: v7x
topology: tpu7x:2x2x1
jax: 0.10.0
libtpu: 0.0.40
codegen_flags: <defaults>
</compile_context>

<pallas_src>
import functools

import jax
import jax.numpy as jnp
from jax import lax
from jax.experimental import pallas as pl
from jax.experimental.pallas import tpu as pltpu


def _softplus(x):
    # numerically-stable softplus (torch.nn.Softplus default), log/exp only.
    return jnp.log(1.0 + jnp.exp(-jnp.abs(x))) + jnp.maximum(x, 0.0)


# ----------------------------------------------------------------------------
# One-time parameter packing (outside jit): every tiny weight/bias goes into a
# single lane-contiguous f32 slab with static, 8-aligned row offsets; the
# enc/dec_fix and Conv1d weights are expanded block-diagonally over the batch
# so single matmuls process all batches at once inside the kernel.
# ----------------------------------------------------------------------------
def pack_params(params, batch):
    (efw, efb, dfw, dfb, emw, emb, esw, esb,
     dmw, dmb, dsw, dsb, flows) = params
    C, lstm_e = efw.shape
    lstm_d = dfw.shape[1]
    P, D = emw.shape
    B = batch
    eye_b = jnp.eye(B, dtype=jnp.float32)

    blocks = []

    def add(name, arr):
        blocks.append((name, jnp.asarray(arr, jnp.float32)))

    # enc/dec "fix" linears expanded so (BC, lstm*B) @ (lstm*B, D) covers all b.
    add('Me', jnp.einsum('cl,xy->xcly', efw, eye_b).reshape(B * C, lstm_e * B))
    add('efb', jnp.tile(efb, B).reshape(B * C, 1))
    add('Md', jnp.einsum('cl,xy->xcly', dfw, eye_b).reshape(B * C, lstm_d * B))
    add('dfb', jnp.tile(dfb, B).reshape(B * C, 1))
    # [mu | presigma] packed per distribution head.
    add('ehw', jnp.concatenate([emw.T, esw.T], axis=1))        # (D, 2P)
    add('ehb', jnp.concatenate([emb, esb]).reshape(1, 2 * P))
    add('dhw', jnp.concatenate([dmw.T, dsw.T], axis=1))
    add('dhb', jnp.concatenate([dmb, dsb]).reshape(1, 2 * P))
    # identity used for the in-kernel (BC,P)->(P,BC) transpose-by-matmul.
    add('eyeP', jnp.eye(P, dtype=jnp.float32))

    for fi, (cw, cb, mw, mb, sw, sb) in enumerate(flows):
        # block-diagonal Conv1d taps, both taps stacked -> one MXU push.
        w0 = jnp.einsum('oi,xy->xoyi', cw[:, :, 0], eye_b).reshape(B * C, B * C)
        w1 = jnp.einsum('oi,xy->xoyi', cw[:, :, 1], eye_b).reshape(B * C, B * C)
        add(f'w01_{fi}', jnp.concatenate([w0, w1], axis=0))     # (2BC, BC)
        add(f'cb_{fi}', jnp.tile(cb, B).reshape(B * C, 1))
        # fold "h = cat(conv[:, :1], conv)" (duplicate first column) into the
        # flow-head weight: absorb row 0 into row 1.
        fhw = jnp.concatenate([mw.T, sw.T], axis=1)             # (L, 2P)
        add(f'fhw_{fi}', fhw[1:].at[0].add(fhw[0]))             # (L-1, 2P)
        add(f'fhb_{fi}', jnp.concatenate([mb, sb]).reshape(1, 2 * P))

    width = max(a.shape[1] for _, a in blocks)
    offs, rows, padded = {}, 0, []
    for name, a in blocks:
        r, c = a.shape
        offs[name] = (rows, (r, c))
        r8 = -(-r // 8) * 8                                     # 8-aligned offsets
        padded.append(jnp.zeros((r8, width), jnp.float32).at[:r, :c].set(a))
        rows += r8
    slab = jnp.concatenate(padded, axis=0)                      # (rows, width)
    return slab, offs, len(flows)


# ----------------------------------------------------------------------------
# Single fused kernel: fix linears, dist heads, sampling, flows, transpose+mix.
# Everything stays in VMEM / vregs; no grid (problem is a few KB).
# ----------------------------------------------------------------------------
def make_fused_kernel(*, offs, n_flow, weight, B, C, D, P, t_start, c_start):
    BC = B * C
    L = D + P
    Lm1 = L - 1

    def kernel(enc_ref, dec_ref, eps_ref, dec_out_ref, slab_ref, out_ref):
        def blk(name):
            r0, (r, c) = offs[name]
            return slab_ref[r0:r0 + r, 0:c]

        # ---- enc_fix / dec_fix: one matmul each for all batches -------------
        acc_e = jnp.dot(blk('Me'), enc_ref[...],
                        preferred_element_type=jnp.float32) + blk('efb')  # (BC,D)
        acc_d = jnp.dot(blk('Md'), dec_ref[...],
                        preferred_element_type=jnp.float32) + blk('dfb')  # (BC,D)

        # ---- distribution heads: [mu | presigma] in one matmul per head -----
        e_head = jnp.dot(acc_e, blk('ehw'),
                         preferred_element_type=jnp.float32) + blk('ehb')  # (BC,2P)
        d_head = jnp.dot(acc_d, blk('dhw'),
                         preferred_element_type=jnp.float32) + blk('dhb')

        # ---- reparameterized sampling (all batches at once) -----------------
        s = e_head[:, :P] + jnp.exp(0.5 * _softplus(e_head[:, P:])) * eps_ref[...]
        s = d_head[:, :P] + jnp.exp(0.5 * _softplus(d_head[:, P:])) * s * 0.1

        # ---- normal flow layers ---------------------------------------------
        x = jnp.concatenate([acc_d, s], axis=1)                 # (BC, L)
        for fi in range(n_flow):
            y = jnp.dot(blk(f'w01_{fi}'), x,
                        preferred_element_type=jnp.float32)      # (2BC, L)
            conv = jnp.maximum(
                y[:BC, :Lm1] + y[BC:, 1:] + blk(f'cb_{fi}'), 0.0)  # (BC, L-1)
            fh = jnp.dot(conv, blk(f'fhw_{fi}'),
                         preferred_element_type=jnp.float32) + blk(f'fhb_{fi}')
            s = fh[:, :P] + jnp.exp(0.5 * fh[:, P:]) * s * 0.1
            if fi + 1 < n_flow:   # residual feed only needed for next layer
                h = jnp.concatenate([conv[:, :1], conv], axis=1)      # (BC, L)
                x = x + 0.1 * jnp.concatenate([h[:, :L - P], s], axis=1)

        # ---- transpose (BC,P)->(P,BC) with one matmul, then mix & store -----
        sT = lax.dot_general(blk('eyeP'), s * weight,
                             (((1,), (1,)), ((), ())),
                             preferred_element_type=jnp.float32)  # (P, BC)
        for b in range(B):
            tail = dec_out_ref[b][t_start:, c_start:]             # (P, C)
            out_ref[b] = sT[:, b * C:(b + 1) * C] + tail * (1.0 - weight)

    return kernel


# ----------------------------------------------------------------------------
# Wrapper: single grid-free pallas_call; only free leading-dim reshapes outside.
# ----------------------------------------------------------------------------
def model_tail(enc_hidden, dec_hidden, eps, dec_out, slab, *,
               offs, n_flow, weight, c_out, pred_len):
    lstm_e, B, D = enc_hidden.shape
    lstm_d = dec_hidden.shape[0]
    C, P = c_out, pred_len
    T, Ctot = dec_out.shape[1], dec_out.shape[2]

    # leading-dim collapses only (layout no-ops in XLA).
    enc_flat = enc_hidden.reshape(lstm_e * B, D)
    dec_flat = dec_hidden.reshape(lstm_d * B, D)
    eps_flat = eps.reshape(B * C, P)

    kernel = make_fused_kernel(offs=offs, n_flow=n_flow, weight=float(weight),
                               B=B, C=C, D=D, P=P,
                               t_start=T - P, c_start=Ctot - C)
    vmem = pl.BlockSpec(memory_space=pltpu.MemorySpace.VMEM)
    return pl.pallas_call(
        kernel,
        out_shape=jax.ShapeDtypeStruct((B, P, C), jnp.float32),
        in_specs=[vmem] * 5,
        out_specs=vmem,
    )(enc_flat, dec_flat, eps_flat, dec_out, slab)


# ----------------------------------------------------------------------------
# Pure-JAX reference (mirrors the torch code) for correctness checking.
# ----------------------------------------------------------------------------
def ref_model_tail(enc_hidden, dec_hidden, eps, dec_out, params,
                   weight, c_out, pred_len):
    (efw, efb, dfw, dfb, emw, emb, esw, esb,
     dmw, dmb, dsw, dsb, flows) = params
    C, P = c_out, pred_len

    enc_fixed = jnp.transpose(
        jnp.transpose(enc_hidden, (1, 2, 0)) @ efw.T + efb, (0, 2, 1))   # (B,C,D)
    dec_fixed = jnp.transpose(
        jnp.transpose(dec_hidden, (1, 2, 0)) @ dfw.T + dfb, (0, 2, 1))

    enc_mu = enc_fixed @ emw.T + emb
    enc_sig = _softplus(enc_fixed @ esw.T + esb)
    dec_mu = dec_fixed @ dmw.T + dmb
    dec_sig = _softplus(dec_fixed @ dsw.T + dsb)

    sample = enc_mu + jnp.exp(0.5 * enc_sig) * eps
    sample = dec_mu + jnp.exp(0.5 * dec_sig) * sample * 0.1

    h = jnp.concatenate([dec_fixed, sample], axis=2)
    L = h.shape[2]
    for (cw, cb, mw, mb, sw, sb) in flows:
        conv = (jnp.einsum('oi,bil->bol', cw[:, :, 0], h[:, :, :L - 1])
                + jnp.einsum('oi,bil->bol', cw[:, :, 1], h[:, :, 1:])
                + cb[None, :, None])
        conv = jnp.maximum(conv, 0.0)
        hh = jnp.concatenate([conv[:, :, :1], conv], axis=2)
        mu = hh @ mw.T + mb
        sg = hh @ sw.T + sb
        sample = mu + jnp.exp(0.5 * sg) * sample * 0.1
        h = h + 0.1 * jnp.concatenate([hh[:, :, :L - P], sample], axis=2)

    return (jnp.transpose(sample, (0, 2, 1)) * weight
            + dec_out[:, -P:, -C:] * (1.0 - weight))


# ----------------------------------------------------------------------------
if __name__ == "__main__":
    # shapes consistent with Model: d_model=32, c_out=4, out_len=8,
    # enc_lstm=dec_lstm=2, label_len=4, batch=2, weight=0.2, normal_layers=1
    B, D, C, P, LSTM, LABEL = 2, 32, 4, 8, 2, 4
    WEIGHT = 0.2
    L = D + P

    key = jax.random.PRNGKey(0)
    ks = list(jax.random.split(key, 24))
    nrm = lambda k, shp, s=0.1: (s * jax.random.normal(k, shp)).astype(jnp.float32)

    # --- parameters (torch Linear layout: weight (out, in)) ---
    enc_fix_w, enc_fix_b = nrm(ks[0], (C, LSTM)), nrm(ks[1], (C,))
    dec_fix_w, dec_fix_b = nrm(ks[2], (C, LSTM)), nrm(ks[3], (C,))
    enc_mu_w, enc_mu_b = nrm(ks[4], (P, D)), nrm(ks[5], (P,))
    enc_sg_w, enc_sg_b = nrm(ks[6], (P, D)), nrm(ks[7], (P,))
    dec_mu_w, dec_mu_b = nrm(ks[8], (P, D)), nrm(ks[9], (P,))
    dec_sg_w, dec_sg_b = nrm(ks[10], (P, D)), nrm(ks[11], (P,))
    fl_conv_w, fl_conv_b = nrm(ks[12], (C, C, 2)), nrm(ks[13], (C,))
    fl_mu_w, fl_mu_b = nrm(ks[14], (P, L)), nrm(ks[15], (P,))
    fl_sg_w, fl_sg_b = nrm(ks[16], (P, L)), nrm(ks[17], (P,))

    flows = [(fl_conv_w, fl_conv_b, fl_mu_w, fl_mu_b, fl_sg_w, fl_sg_b)]
    params = (enc_fix_w, enc_fix_b, dec_fix_w, dec_fix_b,
              enc_mu_w, enc_mu_b, enc_sg_w, enc_sg_b,
              dec_mu_w, dec_mu_b, dec_sg_w, dec_sg_b, flows)

    # --- synthetic stand-ins for the (undefined) encoder / decoder outputs ---
    enc_hidden = nrm(ks[18], (LSTM, B, D), 1.0)
    dec_hidden = nrm(ks[19], (LSTM, B, D), 1.0)
    dec_out = nrm(ks[20], (B, LABEL + P, C), 1.0)
    # TODO(synk): torch uses torch.normal(...).cuda() for eps; replaced with a
    # deterministic jax.random draw supplied as an input.
    eps = jax.random.normal(ks[21], (B, C, P)).astype(jnp.float32)

    # ---------------------------- Pallas path -------------------------------
    slab, offs, n_flow = pack_params(params, B)      # one-time weight packing
    run = jax.jit(functools.partial(model_tail, offs=offs, n_flow=n_flow,
                                    weight=WEIGHT, c_out=C, pred_len=P))
    out = jax.block_until_ready(run(enc_hidden, dec_hidden, eps, dec_out, slab))

    # ---------------------------- reference ---------------------------------
    r_out = ref_model_tail(enc_hidden, dec_hidden, eps, dec_out, params,
                           WEIGHT, C, P)

    assert out.shape == (B, P, C)
    assert jnp.allclose(out, r_out, atol=2e-4, rtol=2e-4), "mismatch vs reference"
    print("KERNEL_OK")
</pallas_src>

<mosaic_0001>
module attributes {stable_mosaic.version = 11 : i64} {
  func.func @kernel(%arg0: memref<4x32xf32, #tpu.memory_space<vmem>>, %arg1: memref<4x32xf32, #tpu.memory_space<vmem>>, %arg2: memref<8x8xf32, #tpu.memory_space<vmem>>, %arg3: memref<2x12x4xf32, #tpu.memory_space<vmem>>, %arg4: memref<192x16xf32, #tpu.memory_space<vmem>>, %arg5: memref<2x8x4xf32, #tpu.memory_space<vmem>>) attributes {dimension_semantics = [], scalar_prefetch = 0 : i64, scratch_operands = 0 : i64, tpu.core_type = #tpu.core_type<tc>} {
    %c0 = arith.constant 0 : index
    %c0_0 = arith.constant 0 : index
    %0 = vector.load %arg4[%c0, %c0_0] : memref<192x16xf32, #tpu.memory_space<vmem>>, vector<8x4xf32>
    %c0_1 = arith.constant 0 : index
    %c0_2 = arith.constant 0 : index
    %1 = vector.load %arg0[%c0_1, %c0_2] : memref<4x32xf32, #tpu.memory_space<vmem>>, vector<4x32xf32>
    %cst = arith.constant dense<0.000000e+00> : vector<8x32xf32>
    %2 = tpu.matmul %0, %1, %cst {dimension_numbers = #tpu.dot_dimension_numbers<[1], [0], [0], [1], [0, 0, 1, 1], [], []>} : vector<8x4xf32>, vector<4x32xf32>, vector<8x32xf32> -> vector<8x32xf32>
    %c8 = arith.constant 8 : index
    %c0_3 = arith.constant 0 : index
    %3 = vector.load %arg4[%c8, %c0_3] : memref<192x16xf32, #tpu.memory_space<vmem>>, vector<8x1xf32>
    %4 = vector.broadcast %3 : vector<8x1xf32> to vector<8x32xf32>
    %5 = arith.addf %2, %4 : vector<8x32xf32>
    %c16 = arith.constant 16 : index
    %c0_4 = arith.constant 0 : index
    %6 = vector.load %arg4[%c16, %c0_4] : memref<192x16xf32, #tpu.memory_space<vmem>>, vector<8x4xf32>
    %c0_5 = arith.constant 0 : index
    %c0_6 = arith.constant 0 : index
    %7 = vector.load %arg1[%c0_5, %c0_6] : memref<4x32xf32, #tpu.memory_space<vmem>>, vector<4x32xf32>
    %cst_7 = arith.constant dense<0.000000e+00> : vector<8x32xf32>
    %8 = tpu.matmul %6, %7, %cst_7 {dimension_numbers = #tpu.dot_dimension_numbers<[1], [0], [0], [1], [0, 0, 1, 1], [], []>} : vector<8x4xf32>, vector<4x32xf32>, vector<8x32xf32> -> vector<8x32xf32>
    %c24 = arith.constant 24 : index
    %c0_8 = arith.constant 0 : index
    %9 = vector.load %arg4[%c24, %c0_8] : memref<192x16xf32, #tpu.memory_space<vmem>>, vector<8x1xf32>
    %10 = vector.broadcast %9 : vector<8x1xf32> to vector<8x32xf32>
    %11 = arith.addf %8, %10 : vector<8x32xf32>
    %c32 = arith.constant 32 : index
    %c0_9 = arith.constant 0 : index
    %12 = vector.load %arg4[%c32, %c0_9] : memref<192x16xf32, #tpu.memory_space<vmem>>, vector<32x16xf32>
    %cst_10 = arith.constant dense<0.000000e+00> : vector<8x16xf32>
    %13 = tpu.matmul %5, %12, %cst_10 {dimension_numbers = #tpu.dot_dimension_numbers<[1], [0], [0], [1], [0, 0, 1, 1], [], []>} : vector<8x32xf32>, vector<32x16xf32>, vector<8x16xf32> -> vector<8x16xf32>
    %c64 = arith.constant 64 : index
    %c0_11 = arith.constant 0 : index
    %14 = vector.load %arg4[%c64, %c0_11] : memref<192x16xf32, #tpu.memory_space<vmem>>, vector<1x16xf32>
    %15 = vector.broadcast %14 : vector<1x16xf32> to vector<8x16xf32>
    %16 = arith.addf %13, %15 : vector<8x16xf32>
    %c72 = arith.constant 72 : index
    %c0_12 = arith.constant 0 : index
    %17 = vector.load %arg4[%c72, %c0_12] : memref<192x16xf32, #tpu.memory_space<vmem>>, vector<32x16xf32>
    %cst_13 = arith.constant dense<0.000000e+00> : vector<8x16xf32>
    %18 = tpu.matmul %11, %17, %cst_13 {dimension_numbers = #tpu.dot_dimension_numbers<[1], [0], [0], [1], [0, 0, 1, 1], [], []>} : vector<8x32xf32>, vector<32x16xf32>, vector<8x16xf32> -> vector<8x16xf32>
    %c104 = arith.constant 104 : index
    %c0_14 = arith.constant 0 : index
    %19 = vector.load %arg4[%c104, %c0_14] : memref<192x16xf32, #tpu.memory_space<vmem>>, vector<1x16xf32>
    %20 = vector.broadcast %19 : vector<1x16xf32> to vector<8x16xf32>
    %21 = arith.addf %18, %20 : vector<8x16xf32>
    %22 = vector.extract_strided_slice %16 {offsets = [0, 0], sizes = [8, 8], strides = [1, 1]} : vector<8x16xf32> to vector<8x8xf32>
    %23 = vector.extract_strided_slice %16 {offsets = [0, 8], sizes = [8, 8], strides = [1, 1]} : vector<8x16xf32> to vector<8x8xf32>
    %24 = math.absf %23 : vector<8x8xf32>
    %cst_15 = arith.constant 0.000000e+00 : f32
    %25 = vector.broadcast %cst_15 : f32 to vector<8x8xf32>
    %26 = arith.subf %25, %24 : vector<8x8xf32>
    %27 = math.exp %26 : vector<8x8xf32>
    %cst_16 = arith.constant 1.000000e+00 : f32
    %28 = vector.broadcast %cst_16 : f32 to vector<8x8xf32>
    %29 = arith.addf %28, %27 : vector<8x8xf32>
    %30 = math.log %29 : vector<8x8xf32>
    %cst_17 = arith.constant 0.000000e+00 : f32
    %31 = vector.broadcast %cst_17 : f32 to vector<8x8xf32>
    %32 = arith.maximumf %23, %31 : vector<8x8xf32>
    %33 = arith.addf %30, %32 : vector<8x8xf32>
    %cst_18 = arith.constant 5.000000e-01 : f32
    %34 = vector.broadcast %cst_18 : f32 to vector<8x8xf32>
    %35 = arith.mulf %34, %33 : vector<8x8xf32>
    %36 = math.exp %35 : vector<8x8xf32>
    %c0_19 = arith.constant 0 : index
    %c0_20 = arith.constant 0 : index
    %37 = vector.load %arg2[%c0_19, %c0_20] : memref<8x8xf32, #tpu.memory_space<vmem>>, vector<8x8xf32>
    %38 = arith.mulf %36, %37 : vector<8x8xf32>
    %39 = arith.addf %22, %38 : vector<8x8xf32>
    %40 = vector.extract_strided_slice %21 {offsets = [0, 0], sizes = [8, 8], strides = [1, 1]} : vector<8x16xf32> to vector<8x8xf32>
    %41 = vector.extract_strided_slice %21 {offsets = [0, 8], sizes = [8, 8], strides = [1, 1]} : vector<8x16xf32> to vector<8x8xf32>
    %42 = math.absf %41 : vector<8x8xf32>
    %cst_21 = arith.constant 0.000000e+00 : f32
    %43 = vector.broadcast %cst_21 : f32 to vector<8x8xf32>
    %44 = arith.subf %43, %42 : vector<8x8xf32>
    %45 = math.exp %44 : vector<8x8xf32>
    %cst_22 = arith.constant 1.000000e+00 : f32
    %46 = vector.broadcast %cst_22 : f32 to vector<8x8xf32>
    %47 = arith.addf %46, %45 : vector<8x8xf32>
    %48 = math.log %47 : vector<8x8xf32>
    %cst_23 = arith.constant 0.000000e+00 : f32
    %49 = vector.broadcast %cst_23 : f32 to vector<8x8xf32>
    %50 = arith.maximumf %41, %49 : vector<8x8xf32>
    %51 = arith.addf %48, %50 : vector<8x8xf32>
    %cst_24 = arith.constant 5.000000e-01 : f32
    %52 = vector.broadcast %cst_24 : f32 to vector<8x8xf32>
    %53 = arith.mulf %52, %51 : vector<8x8xf32>
    %54 = math.exp %53 : vector<8x8xf32>
    %55 = arith.mulf %54, %39 : vector<8x8xf32>
    %cst_25 = arith.constant 1.000000e-01 : f32
    %56 = vector.broadcast %cst_25 : f32 to vector<8x8xf32>
    %57 = arith.mulf %55, %56 : vector<8x8xf32>
    %58 = arith.addf %40, %57 : vector<8x8xf32>
    %59 = tpu.concatenate %11, %58 in 1 : vector<8x32xf32>, vector<8x8xf32> -> vector<8x40xf32>
    %c120 = arith.constant 120 : index
    %c0_26 = arith.constant 0 : index
    %60 = vector.load %arg4[%c120, %c0_26] : memref<192x16xf32, #tpu.memory_space<vmem>>, vector<16x8xf32>
    %cst_27 = arith.constant dense<0.000000e+00> : vector<16x40xf32>
    %61 = tpu.matmul %60, %59, %cst_27 {dimension_numbers = #tpu.dot_dimension_numbers<[1], [0], [0], [1], [0, 0, 1, 1], [], []>} : vector<16x8xf32>, vector<8x40xf32>, vector<16x40xf32> -> vector<16x40xf32>
    %62 = vector.extract_strided_slice %61 {offsets = [0, 0], sizes = [8, 39], strides = [1, 1]} : vector<16x40xf32> to vector<8x39xf32>
    %63 = vector.extract_strided_slice %61 {offsets = [8, 1], sizes = [8, 39], strides = [1, 1]} : vector<16x40xf32> to vector<8x39xf32>
    %64 = arith.addf %62, %63 : vector<8x39xf32>
    %c136 = arith.constant 136 : index
    %c0_28 = arith.constant 0 : index
    %65 = vector.load %arg4[%c136, %c0_28] : memref<192x16xf32, #tpu.memory_space<vmem>>, vector<8x1xf32>
    %66 = vector.broadcast %65 : vector<8x1xf32> to vector<8x39xf32>
    %67 = arith.addf %64, %66 : vector<8x39xf32>
    %cst_29 = arith.constant 0.000000e+00 : f32
    %68 = vector.broadcast %cst_29 : f32 to vector<8x39xf32>
    %69 = arith.maximumf %67, %68 : vector<8x39xf32>
    %c144 = arith.constant 144 : index
    %c0_30 = arith.constant 0 : index
    %70 = vector.load %arg4[%c144, %c0_30] : memref<192x16xf32, #tpu.memory_space<vmem>>, vector<39x16xf32>
    %cst_31 = arith.constant dense<0.000000e+00> : vector<8x16xf32>
    %71 = tpu.matmul %69, %70, %cst_31 {dimension_numbers = #tpu.dot_dimension_numbers<[1], [0], [0], [1], [0, 0, 1, 1], [], []>} : vector<8x39xf32>, vector<39x16xf32>, vector<8x16xf32> -> vector<8x16xf32>
    %c184 = arith.constant 184 : index
    %c0_32 = arith.constant 0 : index
    %72 = vector.load %arg4[%c184, %c0_32] : memref<192x16xf32, #tpu.memory_space<vmem>>, vector<1x16xf32>
    %73 = vector.broadcast %72 : vector<1x16xf32> to vector<8x16xf32>
    %74 = arith.addf %71, %73 : vector<8x16xf32>
    %75 = vector.extract_strided_slice %74 {offsets = [0, 0], sizes = [8, 8], strides = [1, 1]} : vector<8x16xf32> to vector<8x8xf32>
    %76 = vector.extract_strided_slice %74 {offsets = [0, 8], sizes = [8, 8], strides = [1, 1]} : vector<8x16xf32> to vector<8x8xf32>
    %cst_33 = arith.constant 5.000000e-01 : f32
    %77 = vector.broadcast %cst_33 : f32 to vector<8x8xf32>
    %78 = arith.mulf %77, %76 : vector<8x8xf32>
    %79 = math.exp %78 : vector<8x8xf32>
    %80 = arith.mulf %79, %58 : vector<8x8xf32>
    %cst_34 = arith.constant 1.000000e-01 : f32
    %81 = vector.broadcast %cst_34 : f32 to vector<8x8xf32>
    %82 = arith.mulf %80, %81 : vector<8x8xf32>
    %83 = arith.addf %75, %82 : vector<8x8xf32>
    %c112 = arith.constant 112 : index
    %c0_35 = arith.constant 0 : index
    %84 = vector.load %arg4[%c112, %c0_35] : memref<192x16xf32, #tpu.memory_space<vmem>>, vector<8x8xf32>
    %cst_36 = arith.constant 2.000000e-01 : f32
    %85 = vector.broadcast %cst_36 : f32 to vector<8x8xf32>
    %86 = arith.mulf %83, %85 : vector<8x8xf32>
    %cst_37 = arith.constant dense<0.000000e+00> : vector<8x8xf32>
    %87 = tpu.matmul %84, %86, %cst_37 {dimension_numbers = #tpu.dot_dimension_numbers<[1], [1], [0], [0], [0, 0, 1, 0], [], []>} : vector<8x8xf32>, vector<8x8xf32>, vector<8x8xf32> -> vector<8x8xf32>
    %c0_38 = arith.constant 0 : index
    %c0_39 = arith.constant 0 : index
    %c0_40 = arith.constant 0 : index
    %88 = vector.load %arg3[%c0_38, %c0_39, %c0_40] : memref<2x12x4xf32, #tpu.memory_space<vmem>>, vector<1x12x4xf32>
    %89 = vector.shape_cast %88 : vector<1x12x4xf32> to vector<12x4xf32>
    %90 = vector.extract_strided_slice %89 {offsets = [4, 0], sizes = [8, 4], strides = [1, 1]} : vector<12x4xf32> to vector<8x4xf32>
    %91 = vector.extract_strided_slice %87 {offsets = [0, 0], sizes = [8, 4], strides = [1, 1]} : vector<8x8xf32> to vector<8x4xf32>
    %cst_41 = arith.constant 8.000000e-01 : f32
    %92 = vector.broadcast %cst_41 : f32 to vector<8x4xf32>
    %93 = arith.mulf %90, %92 : vector<8x4xf32>
    %94 = arith.addf %91, %93 : vector<8x4xf32>
    %c0_42 = arith.constant 0 : index
    %c0_43 = arith.constant 0 : index
    %c0_44 = arith.constant 0 : index
    %95 = vector.load %arg5[%c0_42, %c0_43, %c0_44] : memref<2x8x4xf32, #tpu.memory_space<vmem>>, vector<1x8x4xf32>
    %96 = vector.shape_cast %95 : vector<1x8x4xf32> to vector<8x4xf32>
    %97 = vector.shape_cast %94 : vector<8x4xf32> to vector<1x8x4xf32>
    tpu.vector_store %arg5[%c0_42, %c0_43, %c0_44], %97 {strides = array<i32>} : memref<2x8x4xf32, #tpu.memory_space<vmem>>, vector<1x8x4xf32>,
    %c1 = arith.constant 1 : index
    %c0_45 = arith.constant 0 : index
    %c0_46 = arith.constant 0 : index
    %98 = vector.load %arg3[%c1, %c0_45, %c0_46] : memref<2x12x4xf32, #tpu.memory_space<vmem>>, vector<1x12x4xf32>
    %99 = vector.shape_cast %98 : vector<1x12x4xf32> to vector<12x4xf32>
    %100 = vector.extract_strided_slice %99 {offsets = [4, 0], sizes = [8, 4], strides = [1, 1]} : vector<12x4xf32> to vector<8x4xf32>
    %101 = vector.extract_strided_slice %87 {offsets = [0, 4], sizes = [8, 4], strides = [1, 1]} : vector<8x8xf32> to vector<8x4xf32>
    %cst_47 = arith.constant 8.000000e-01 : f32
    %102 = vector.broadcast %cst_47 : f32 to vector<8x4xf32>
    %103 = arith.mulf %100, %102 : vector<8x4xf32>
    %104 = arith.addf %101, %103 : vector<8x4xf32>
    %c1_48 = arith.constant 1 : index
    %c0_49 = arith.constant 0 : index
    %c0_50 = arith.constant 0 : index
    %105 = vector.load %arg5[%c1_48, %c0_49, %c0_50] : memref<2x8x4xf32, #tpu.memory_space<vmem>>, vector<1x8x4xf32>
    %106 = vector.shape_cast %105 : vector<1x8x4xf32> to vector<8x4xf32>
    %107 = vector.shape_cast %104 : vector<8x4xf32> to vector<1x8x4xf32>
    tpu.vector_store %arg5[%c1_48, %c0_49, %c0_50], %107 {strides = array<i32>} : memref<2x8x4xf32, #tpu.memory_space<vmem>>, vector<1x8x4xf32>,
    return
  }
}

</mosaic_0001>

<llo_original>
// kernel: model_tail.1
$region0: #{model_tail.1}
  #allocation0 [shape = 'u32[]', space=smem, size = 0x4, offset = 0x4, fixed_abs, tag = 'smem constant byte address 0x4 - core index']
  #allocation1 [shape = 'u32[144,128]{1,0:T(1,128)}', space=vmem, size = 0x12000, scoped, tag = 'internal scratch']
  %s0 = inlined_call_operand.vmem [shape: f32[4,32], index: 0, kind: input, shape index: {}]
  %s1 = inlined_call_operand.vmem [shape: f32[4,32], index: 1, kind: input, shape index: {}]
  %s2 = inlined_call_operand.vmem [shape: f32[8,8], index: 2, kind: input, shape index: {}]
  %s3 = inlined_call_operand.vmem [shape: f32[2,12,4], index: 3, kind: input, shape index: {}]
  %s4 = inlined_call_operand.vmem [shape: f32[192,16], index: 4, kind: input, shape index: {}]
  %s5 = inlined_call_operand.vmem [shape: f32[2,8,4], index: 5, kind: output, shape index: {}]
  %s6 = sld [smem:[#allocation0]]
  $region30: #{model_tail.1} parent=0
    _
  %s8 = ssub.s32 1, %s6
  %s9 = scalar_select 0, %s8, %s6
  // Predicated region
  $region2: #{model_tail.1} parent=0 // pred_check
    _
  $region3: #{model_tail.1} parent=0 // pred_check_branch
    %11 = sbr.rel (0) target = $region5
  $region4: #{model_tail.1} parent=0 // pred_region
    _
  $region5: #{model_tail.1} parent=0 // pred_fallthru
    _
  // Predicated region
  $region6: #{model_tail.1} parent=0 // pred_check
    _
  $region7: #{model_tail.1} parent=0 // pred_check_branch
    %13 = sbr.rel (0) target = $region9
  $region8: #{model_tail.1} parent=0 // pred_region
    _
  $region9: #{model_tail.1} parent=0 // pred_fallthru
    _
  // Predicated region
  $region10: #{model_tail.1} parent=0 // pred_check
    _
  $region11: #{model_tail.1} parent=0 // pred_check_branch
    %15 = sbr.rel (0) target = $region13
  $region12: #{model_tail.1} parent=0 // pred_region
    _
  $region13: #{model_tail.1} parent=0 // pred_fallthru
    _
  // Predicated region
  $region14: #{model_tail.1} parent=0 // pred_check
    _
  $region15: #{model_tail.1} parent=0 // pred_check_branch
    %17 = sbr.rel (0) target = $region17
  $region16: #{model_tail.1} parent=0 // pred_region
    _
  $region17: #{model_tail.1} parent=0 // pred_fallthru
    _
  // Predicated region
  $region18: #{model_tail.1} parent=0 // pred_check
    _
  $region19: #{model_tail.1} parent=0 // pred_check_branch
    %19 = sbr.rel (0) target = $region21
  $region20: #{model_tail.1} parent=0 // pred_region
    _
  $region21: #{model_tail.1} parent=0 // pred_fallthru
    _
  %v20 = vld [vmem:[%s4] sm:$0xff]
  %v21 = vld [vmem:[%s0] sm:$0xf]
  %v22 = vld [vmem:[%s4 + $0x8] sm:$0xff]
  %24 = vset.pattern.permute.xlu0 0
  %25 = vperm.xlu0 %24, %v22
  %v26 = vpop.permute.xlu0 %25
  %vm28 = vcmask 31744
  %v30 = vsel %vm28, %v20, 0
  %vm32 = vcmask 1043456
  %v34 = vsel %vm32, %v21, 0
  %36 = vmatprep.subr.mxu0 0.0
  %37 = vmatpush1.msra.mxu0 %v34
  %38 = vmatprep.subr.mxu0 0.0
  %39 = vmatpush1.msra.mxu0 0.0
  %40 = vmatprep.subr.mxu0 0.0
  %41 = vmatpush1.msra.mxu0 0.0
  %42 = vmatprep.subr.mxu0 0.0
  %43 = vmatpush1.msra.mxu0 0.0
  %44 = vmatprep.subr.mxu0 0.0
  %45 = vmatpush1.msra.mxu0 0.0
  %46 = vmatprep.subr.mxu0 0.0
  %47 = vmatpush1.msra.mxu0 0.0
  %48 = vmatprep.subr.mxu0 0.0
  %49 = vmatpush1.msra.mxu0 0.0
  %50 = vmatprep.subr.mxu0 0.0
  %51 = vmatpush1.msra.mxu0 0.0
  %52 = vmatprep.subr.mxu0 0.0
  %53 = vmatpush1.msra.mxu0 0.0
  %54 = vmatprep.subr.mxu0 0.0
  %55 = vmatpush1.msra.mxu0 0.0
  %56 = vmatprep.subr.mxu0 0.0
  %57 = vmatpush1.msra.mxu0 0.0
  %58 = vmatprep.subr.mxu0 0.0
  %59 = vmatpush1.msra.mxu0 0.0
  %60 = vmatprep.subr.mxu0 0.0
  %61 = vmatpush1.msra.mxu0 0.0
  %62 = vmatprep.subr.mxu0 0.0
  %63 = vmatpush1.msra.mxu0 0.0
  %64 = vmatprep.subr.mxu0 0.0
  %65 = vmatpush1.msra.mxu0 0.0
  %66 = vmatprep.subr.mxu0 0.0
  %67 = vmatpush1.msra.mxu0 0.0
  %68 = vmatprep.subr.mxu0 0.0
  %69 = vmatpush1.msra.mxu0 0.0
  %70 = vmatprep.subr.mxu0 0.0
  %71 = vmatpush1.msra.mxu0 0.0
  %72 = vmatprep.subr.mxu0 0.0
  %73 = vmatpush1.msra.mxu0 0.0
  %74 = vmatprep.subr.mxu0 0.0
  %75 = vmatpush1.msra.mxu0 0.0
  %76 = vmatprep.subr.mxu0 0.0
  %77 = vmatpush1.msra.mxu0 0.0
  %78 = vmatprep.subr.mxu0 0.0
  %79 = vmatpush1.msra.mxu0 0.0
  %80 = vmatprep.subr.mxu0 0.0
  %81 = vmatpush1.msra.mxu0 0.0
  %82 = vmatprep.subr.mxu0 0.0
  %83 = vmatpush1.msra.mxu0 0.0
  %84 = vmatprep.subr.mxu0 0.0
  %85 = vmatpush1.msra.mxu0 0.0
  %86 = vmatprep.subr.mxu0 0.0
  %87 = vmatpush1.msra.mxu0 0.0
  %88 = vmatprep.subr.mxu0 0.0
  %89 = vmatpush1.msra.mxu0 0.0
  %90 = vmatprep.subr.mxu0 0.0
  %91 = vmatpush1.msra.mxu0 0.0
  %92 = vmatprep.subr.mxu0 0.0
  %93 = vmatpush1.msra.mxu0 0.0
  %94 = vmatprep.subr.mxu0 0.0
  %95 = vmatpush1.msra.mxu0 0.0
  %96 = vmatprep.subr.mxu0 0.0
  %97 = vmatpush1.msra.mxu0 0.0
  %98 = vmatprep.subr.mxu0 0.0
  %99 = vmatpush1.msra.mxu0 0.0
  %100 = vmatprep.mubr.f32.mxu0 0.0
  %101 = vmatmul.mubr.f32.gmra.mrb[0].mxu0 %v30
  %v102 = vpop.f32.mrb[0].mxu0
  %v103 = vadd.f32 %v26, %v102
  %v104 = vpop.f32.mrb[0].mxu0
  %105 = vdwg.mxu0
  %v106 = vld [vmem:[%s4 + $0x10] sm:$0xff]
  %v107 = vld [vmem:[%s1] sm:$0xf]
  %v108 = vld [vmem:[%s4 + $0x18] sm:$0xff]
  %110 = vset.pattern.permute.xlu0 0
  %111 = vperm.xlu0 %110, %v108
  %v112 = vpop.permute.xlu0 %111
  %v115 = vsel %vm28, %v106, 0
  %v118 = vsel %vm32, %v107, 0
  %120 = vmatprep.subr.mxu0 0.0
  %121 = vmatpush1.msra.mxu0 %v118
  %122 = vmatprep.subr.mxu0 0.0
  %123 = vmatpush1.msra.mxu0 0.0
  %124 = vmatprep.subr.mxu0 0.0
  %125 = vmatpush1.msra.mxu0 0.0
  %126 = vmatprep.subr.mxu0 0.0
  %127 = vmatpush1.msra.mxu0 0.0
  %128 = vmatprep.subr.mxu0 0.0
  %129 = vmatpush1.msra.mxu0 0.0
  %130 = vmatprep.subr.mxu0 0.0
  %131 = vmatpush1.msra.mxu0 0.0
  %132 = vmatprep.subr.mxu0 0.0
  %133 = vmatpush1.msra.mxu0 0.0
  %134 = vmatprep.subr.mxu0 0.0
  %135 = vmatpush1.msra.mxu0 0.0
  %136 = vmatprep.subr.mxu0 0.0
  %137 = vmatpush1.msra.mxu0 0.0
  %138 = vmatprep.subr.mxu0 0.0
  %139 = vmatpush1.msra.mxu0 0.0
  %140 = vmatprep.subr.mxu0 0.0
  %141 = vmatpush1.msra.mxu0 0.0
  %142 = vmatprep.subr.mxu0 0.0
  %143 = vmatpush1.msra.mxu0 0.0
  %144 = vmatprep.subr.mxu0 0.0
  %145 = vmatpush1.msra.mxu0 0.0
  %146 = vmatprep.subr.mxu0 0.0
  %147 = vmatpush1.msra.mxu0 0.0
  %148 = vmatprep.subr.mxu0 0.0
  %149 = vmatpush1.msra.mxu0 0.0
  %150 = vmatprep.subr.mxu0 0.0
  %151 = vmatpush1.msra.mxu0 0.0
  %152 = vmatprep.subr.mxu0 0.0
  %153 = vmatpush1.msra.mxu0 0.0
  %154 = vmatprep.subr.mxu0 0.0
  %155 = vmatpush1.msra.mxu0 0.0
  %156 = vmatprep.subr.mxu0 0.0
  %157 = vmatpush1.msra.mxu0 0.0
  %158 = vmatprep.subr.mxu0 0.0
  %159 = vmatpush1.msra.mxu0 0.0
  %160 = vmatprep.subr.mxu0 0.0
  %161 = vmatpush1.msra.mxu0 0.0
  %162 = vmatprep.subr.mxu0 0.0
  %163 = vmatpush1.msra.mxu0 0.0
  %164 = vmatprep.subr.mxu0 0.0
  %165 = vmatpush1.msra.mxu0 0.0
  %166 = vmatprep.subr.mxu0 0.0
  %167 = vmatpush1.msra.mxu0 0.0
  %168 = vmatprep.subr.mxu0 0.0
  %169 = vmatpush1.msra.mxu0 0.0
  %170 = vmatprep.subr.mxu0 0.0
  %171 = vmatpush1.msra.mxu0 0.0
  %172 = vmatprep.subr.mxu0 0.0
  %173 = vmatpush1.msra.mxu0 0.0
  %174 = vmatprep.subr.mxu0 0.0
  %175 = vmatpush1.msra.mxu0 0.0
  %176 = vmatprep.subr.mxu0 0.0
  %177 = vmatpush1.msra.mxu0 0.0
  %178 = vmatprep.subr.mxu0 0.0
  %179 = vmatpush1.msra.mxu0 0.0
  %180 = vmatprep.subr.mxu0 0.0
  %181 = vmatpush1.msra.mxu0 0.0
  %182 = vmatprep.subr.mxu0 0.0
  %183 = vmatpush1.msra.mxu0 0.0
  %184 = vmatprep.mubr.f32.mxu0 0.0
  %185 = vmatmul.mubr.f32.gmra.mrb[0].mxu0 %v115
  %v186 = vpop.f32.mrb[0].mxu0
  %v187 = vadd.f32 %v112, %v186
  %v188 = vpop.f32.mrb[0].mxu0
  %189 = vdwg.mxu0
  %v190 = vld [vmem:[%s4 + $0x20] sm:$0xff]
  %v191 = vld [vmem:[%s4 + $0x28] sm:$0xff]
  %v192 = vld [vmem:[%s4 + $0x30] sm:$0xff]
  %v193 = vld [vmem:[%s4 + $0x38] sm:$0xff]
  %v194 = vld [vmem:[%s4 + $0x40] sm:$0x1]
  %v195 = vlaneseq
  %v196 = vshrl.u32 %v195, 7
  %v197 = vsub.s32 0, %v196
  %v198 = vrot.slane %v194, %v197
  %vm199 = vcmask 261120
  %v201 = vsel %vm199, %v103, 0
  %203 = vmatprep.subr.mxu0 0.0
  %204 = vmatpush1.msra.mxu0 %v190
  %205 = vmatprep.subr.mxu0 0.0
  %206 = vmatpush1.msra.mxu0 %v191
  %207 = vmatprep.subr.mxu0 0.0
  %208 = vmatpush1.msra.mxu0 %v192
  %209 = vmatprep.subr.mxu0 0.0
  %210 = vmatpush1.msra.mxu0 %v193
  %211 = vmatprep.subr.mxu0 0.0
  %212 = vmatpush1.msra.mxu0 0.0
  %213 = vmatprep.subr.mxu0 0.0
  %214 = vmatpush1.msra.mxu0 0.0
  %215 = vmatprep.subr.mxu0 0.0
  %216 = vmatpush1.msra.mxu0 0.0
  %217 = vmatprep.subr.mxu0 0.0
  %218 = vmatpush1.msra.mxu0 0.0
  %219 = vmatprep.subr.mxu0 0.0
  %220 = vmatpush1.msra.mxu0 0.0
  %221 = vmatprep.subr.mxu0 0.0
  %222 = vmatpush1.msra.mxu0 0.0
  %223 = vmatprep.subr.mxu0 0.0
  %224 = vmatpush1.msra.mxu0 0.0
  %225 = vmatprep.subr.mxu0 0.0
  %226 = vmatpush1.msra.mxu0 0.0
  %227 = vmatprep.subr.mxu0 0.0
  %228 = vmatpush1.msra.mxu0 0.0
  %229 = vmatprep.subr.mxu0 0.0
  %230 = vmatpush1.msra.mxu0 0.0
  %231 = vmatprep.subr.mxu0 0.0
  %232 = vmatpush1.msra.mxu0 0.0
  %233 = vmatprep.subr.mxu0 0.0
  %234 = vmatpush1.msra.mxu0 0.0
  %235 = vmatprep.subr.mxu0 0.0
  %236 = vmatpush1.msra.mxu0 0.0
  %237 = vmatprep.subr.mxu0 0.0
  %238 = vmatpush1.msra.mxu0 0.0
  %239 = vmatprep.subr.mxu0 0.0
  %240 = vmatpush1.msra.mxu0 0.0
  %241 = vmatprep.subr.mxu0 0.0
  %242 = vmatpush1.msra.mxu0 0.0
  %243 = vmatprep.subr.mxu0 0.0
  %244 = vmatpush1.msra.mxu0 0.0
  %245 = vmatprep.subr.mxu0 0.0
  %246 = vmatpush1.msra.mxu0 0.0
  %247 = vmatprep.subr.mxu0 0.0
  %248 = vmatpush1.msra.mxu0 0.0
  %249 = vmatprep.subr.mxu0 0.0
  %250 = vmatpush1.msra.mxu0 0.0
  %251 = vmatprep.subr.mxu0 0.0
  %252 = vmatpush1.msra.mxu0 0.0
  %253 = vmatprep.subr.mxu0 0.0
  %254 = vmatpush1.msra.mxu0 0.0
  %255 = vmatprep.subr.mxu0 0.0
  %256 = vmatpush1.msra.mxu0 0.0
  %257 = vmatprep.subr.mxu0 0.0
  %258 = vmatpush1.msra.mxu0 0.0
  %259 = vmatprep.subr.mxu0 0.0
  %260 = vmatpush1.msra.mxu0 0.0
  %261 = vmatprep.subr.mxu0 0.0
  %262 = vmatpush1.msra.mxu0 0.0
  %263 = vmatprep.subr.mxu0 0.0
  %264 = vmatpush1.msra.mxu0 0.0
  %265 = vmatprep.subr.mxu0 0.0
  %266 = vmatpush1.msra.mxu0 0.0
  %267 = vmatprep.mubr.f32.mxu0 0.0
  %268 = vmatmul.mubr.f32.gmra.mrb[0].mxu0 %v201
  %v269 = vpop.f32.mrb[0].mxu0
  %v270 = vadd.f32 %v198, %v269
  %v271 = vpop.f32.mrb[0].mxu0
  %272 = vdwg.mxu0
  %v273 = vld [vmem:[%s4 + $0x48] sm:$0xff]
  %v274 = vld [vmem:[%s4 + $0x50] sm:$0xff]
  %v275 = vld [vmem:[%s4 + $0x58] sm:$0xff]
  %v276 = vld [vmem:[%s4 + $0x60] sm:$0xff]
  %v277 = vld [vmem:[%s4 + $0x68] sm:$0x1]
  %v278 = vlaneseq
  %v279 = vshrl.u32 %v278, 7
  %v280 = vsub.s32 0, %v279
  %v281 = vrot.slane %v277, %v280
  %v283 = vsel %vm199, %v187, 0
  %285 = vmatprep.subr.mxu0 0.0
  %286 = vmatpush1.msra.mxu0 %v273
  %287 = vmatprep.subr.mxu0 0.0
  %288 = vmatpush1.msra.mxu0 %v274
  %289 = vmatprep.subr.mxu0 0.0
  %290 = vmatpush1.msra.mxu0 %v275
  %291 = vmatprep.subr.mxu0 0.0
  %292 = vmatpush1.msra.mxu0 %v276
  %293 = vmatprep.subr.mxu0 0.0
  %294 = vmatpush1.msra.mxu0 0.0
  %295 = vmatprep.subr.mxu0 0.0
  %296 = vmatpush1.msra.mxu0 0.0
  %297 = vmatprep.subr.mxu0 0.0
  %298 = vmatpush1.msra.mxu0 0.0
  %299 = vmatprep.subr.mxu0 0.0
  %300 = vmatpush1.msra.mxu0 0.0
  %301 = vmatprep.subr.mxu0 0.0
  %302 = vmatpush1.msra.mxu0 0.0
  %303 = vmatprep.subr.mxu0 0.0
  %304 = vmatpush1.msra.mxu0 0.0
  %305 = vmatprep.subr.mxu0 0.0
  %306 = vmatpush1.msra.mxu0 0.0
  %307 = vmatprep.subr.mxu0 0.0
  %308 = vmatpush1.msra.mxu0 0.0
  %309 = vmatprep.subr.mxu0 0.0
  %310 = vmatpush1.msra.mxu0 0.0
  %311 = vmatprep.subr.mxu0 0.0
  %312 = vmatpush1.msra.mxu0 0.0
  %313 = vmatprep.subr.mxu0 0.0
  %314 = vmatpush1.msra.mxu0 0.0
  %315 = vmatprep.subr.mxu0 0.0
  %316 = vmatpush1.msra.mxu0 0.0
  %317 = vmatprep.subr.mxu0 0.0
  %318 = vmatpush1.msra.mxu0 0.0
  %319 = vmatprep.subr.mxu0 0.0
  %320 = vmatpush1.msra.mxu0 0.0
  %321 = vmatprep.subr.mxu0 0.0
  %322 = vmatpush1.msra.mxu0 0.0
  %323 = vmatprep.subr.mxu0 0.0
  %324 = vmatpush1.msra.mxu0 0.0
  %325 = vmatprep.subr.mxu0 0.0
  %326 = vmatpush1.msra.mxu0 0.0
  %327 = vmatprep.subr.mxu0 0.0
  %328 = vmatpush1.msra.mxu0 0.0
  %329 = vmatprep.subr.mxu0 0.0
  %330 = vmatpush1.msra.mxu0 0.0
  %331 = vmatprep.subr.mxu0 0.0
  %332 = vmatpush1.msra.mxu0 0.0
  %333 = vmatprep.subr.mxu0 0.0
  %334 = vmatpush1.msra.mxu0 0.0
  %335 = vmatprep.subr.mxu0 0.0
  %336 = vmatpush1.msra.mxu0 0.0
  %337 = vmatprep.subr.mxu0 0.0
  %338 = vmatpush1.msra.mxu0 0.0
  %339 = vmatprep.subr.mxu0 0.0
  %340 = vmatpush1.msra.mxu0 0.0
  %341 = vmatprep.subr.mxu0 0.0
  %342 = vmatpush1.msra.mxu0 0.0
  %343 = vmatprep.subr.mxu0 0.0
  %344 = vmatpush1.msra.mxu0 0.0
  %345 = vmatprep.subr.mxu0 0.0
  %346 = vmatpush1.msra.mxu0 0.0
  %347 = vmatprep.subr.mxu0 0.0
  %348 = vmatpush1.msra.mxu0 0.0
  %349 = vmatprep.mubr.f32.mxu0 0.0
  %350 = vmatmul.mubr.f32.gmra.mrb[0].mxu0 %v283
  %v351 = vpop.f32.mrb[0].mxu0
  %v352 = vadd.f32 %v281, %v351
  %v353 = vpop.f32.mrb[0].mxu0
  %354 = vdwg.mxu0
  %v355 = vand.u32 2147483647, %v270
  %v356 = vsub.f32 0.0, %v355
  %v357 = vmul.f32 %v356, 1.442695
  %v358 = vpow.pop %v357
  %v359 = vadd.f32 %v358, 1.0
  %v360 = vlog2.pop %v359
  %v361 = vmul.f32 %v360, 0.6931472
  %v362 = vmax.f32 %v270, 0.0
  %v363 = vadd.f32 %v361, %v362
  %v364 = vmul.f32 %v363, 0.5
  %v365 = vmul.f32 %v364, 1.442695
  %v366 = vpow.pop %v365
  %v367 = vld [vmem:[%s2] sm:$0xff]
  %369 = vrot.lane.b32.xlu0 %v367, 8
  %v370 = vpop.permute.xlu0 %369
  %v372 = vmul.f32 %v366, %v370
  %374 = vrot.lane.b32.xlu0 %v372, 120
  %v375 = vpop.permute.xlu0 %374
  %v377 = vadd.f32 %v270, %v375
  %v378 = vand.u32 2147483647, %v352
  %v379 = vsub.f32 0.0, %v378
  %v380 = vmul.f32 %v379, 1.442695
  %v381 = vpow.pop %v380
  %v382 = vadd.f32 %v381, 1.0
  %v383 = vlog2.pop %v382
  %v384 = vmul.f32 %v383, 0.6931472
  %v385 = vmax.f32 %v352, 0.0
  %v386 = vadd.f32 %v384, %v385
  %v387 = vmul.f32 %v386, 0.5
  %v388 = vmul.f32 %v387, 1.442695
  %v389 = vpow.pop %v388
  %391 = vrot.lane.b32.xlu0 %v377, 8
  %v392 = vpop.permute.xlu0 %391
  %v394 = vmul.f32 %v389, %v392
  %v395 = vmul.f32 %v394, 0.1
  %397 = vrot.lane.b32.xlu0 %v395, 120
  %v398 = vpop.permute.xlu0 %397
  %v400 = vadd.f32 %v352, %v398
  %402 = vrot.lane.b32.xlu0 %v400, 32
  %v403 = vpop.permute.xlu0 %402
  %v405 = vsel %vm199, %v187, %v403
  %v406 = vld [vmem:[%s4 + $0x78] sm:$0xff]
  %v407 = vld [vmem:[%s4 + $0x80] sm:$0xff]
  %vm408 = vcmask 64512
  %v410 = vsel %vm408, %v406, 0
  %v413 = vsel %vm408, %v407, 0
  %415 = vmatprep.subr.mxu0 0.0
  %416 = vmatpush1.msra.mxu0 %v405
  %417 = vmatprep.subr.mxu0 0.0
  %418 = vmatpush1.msra.mxu0 0.0
  %419 = vmatprep.subr.mxu0 0.0
  %420 = vmatpush1.msra.mxu0 0.0
  %421 = vmatprep.subr.mxu0 0.0
  %422 = vmatpush1.msra.mxu0 0.0
  %423 = vmatprep.subr.mxu0 0.0
  %424 = vmatpush1.msra.mxu0 0.0
  %425 = vmatprep.subr.mxu0 0.0
  %426 = vmatpush1.msra.mxu0 0.0
  %427 = vmatprep.subr.mxu0 0.0
  %428 = vmatpush1.msra.mxu0 0.0
  %429 = vmatprep.subr.mxu0 0.0
  %430 = vmatpush1.msra.mxu0 0.0
  %431 = vmatprep.subr.mxu0 0.0
  %432 = vmatpush1.msra.mxu0 0.0
  %433 = vmatprep.subr.mxu0 0.0
  %434 = vmatpush1.msra.mxu0 0.0
  %435 = vmatprep.subr.mxu0 0.0
  %436 = vmatpush1.msra.mxu0 0.0
  %437 = vmatprep.subr.mxu0 0.0
  %438 = vmatpush1.msra.mxu0 0.0
  %439 = vmatprep.subr.mxu0 0.0
  %440 = vmatpush1.msra.mxu0 0.0
  %441 = vmatprep.subr.mxu0 0.0
  %442 = vmatpush1.msra.mxu0 0.0
  %443 = vmatprep.subr.mxu0 0.0
  %444 = vmatpush1.msra.mxu0 0.0
  %445 = vmatprep.subr.mxu0 0.0
  %446 = vmatpush1.msra.mxu0 0.0
  %447 = vmatprep.subr.mxu0 0.0
  %448 = vmatpush1.msra.mxu0 0.0
  %449 = vmatprep.subr.mxu0 0.0
  %450 = vmatpush1.msra.mxu0 0.0
  %451 = vmatprep.subr.mxu0 0.0
  %452 = vmatpush1.msra.mxu0 0.0
  %453 = vmatprep.subr.mxu0 0.0
  %454 = vmatpush1.msra.mxu0 0.0
  %455 = vmatprep.subr.mxu0 0.0
  %456 = vmatpush1.msra.mxu0 0.0
  %457 = vmatprep.subr.mxu0 0.0
  %458 = vmatpush1.msra.mxu0 0.0
  %459 = vmatprep.subr.mxu0 0.0
  %460 = vmatpush1.msra.mxu0 0.0
  %461 = vmatprep.subr.mxu0 0.0
  %462 = vmatpush1.msra.mxu0 0.0
  %463 = vmatprep.subr.mxu0 0.0
  %464 = vmatpush1.msra.mxu0 0.0
  %465 = vmatprep.subr.mxu0 0.0
  %466 = vmatpush1.msra.mxu0 0.0
  %467 = vmatprep.subr.mxu0 0.0
  %468 = vmatpush1.msra.mxu0 0.0
  %469 = vmatprep.subr.mxu0 0.0
  %470 = vmatpush1.msra.mxu0 0.0
  %471 = vmatprep.subr.mxu0 0.0
  %472 = vmatpush1.msra.mxu0 0.0
  %473 = vmatprep.subr.mxu0 0.0
  %474 = vmatpush1.msra.mxu0 0.0
  %475 = vmatprep.subr.mxu0 0.0
  %476 = vmatpush1.msra.mxu0 0.0
  %477 = vmatprep.subr.mxu0 0.0
  %478 = vmatpush1.msra.mxu0 0.0
  %479 = vmatprep.mubr.f32.mxu0 0.0
  %480 = vmatmul.mubr.f32.gmra.mrb[0].mxu0 %v410
  %v481 = vpop.f32.mrb[0].mxu0
  %v482 = vadd.f32 0.0, %v481
  %v483 = vpop.f32.mrb[0].mxu0
  %484 = vmatprep.mubr.f32.mxu0 0.0
  %485 = vmatmul.mubr.f32.gmra.mrb[0].mxu0 %v413
  %v486 = vpop.f32.mrb[0].mxu0
  %v487 = vadd.f32 0.0, %v486
  %v488 = vpop.f32.mrb[0].mxu0
  %489 = vdwg.mxu0
  %491 = vrot.lane.b32.xlu0 %v487, 127
  %v492 = vpop.permute.xlu0 %491
  %v494 = vadd.f32 %v482, %v492
  %v495 = vld [vmem:[%s4 + $0x88] sm:$0xff]
  %497 = vset.pattern.permute.xlu0 0
  %498 = vperm.xlu0 %497, %v495
  %v499 = vpop.permute.xlu0 %498
  %v501 = vadd.f32 %v494, %v499
  %v502 = vmax.f32 %v501, 0.0
  %v503 = vld [vmem:[%s4 + $0x90] sm:$0xff]
  %v504 = vld [vmem:[%s4 + $0x98] sm:$0xff]
  %v505 = vld [vmem:[%s4 + $0xa0] sm:$0xff]
  %v506 = vld [vmem:[%s4 + $0xa8] sm:$0xff]
  %v507 = vld [vmem:[%s4 + $0xb0] sm:$0x7f]
  %v508 = vld [vmem:[%s4 + $0xb8] sm:$0x1]
  %v509 = vlaneseq
  %v510 = vshrl.u32 %v509, 7
  %v511 = vsub.s32 0, %v510
  %v512 = vrot.slane %v508, %v511
  %vm513 = vcmask 318464
  %v515 = vsel %vm513, %v502, 0
  %vm517 = vcmask 1046528
  %v519 = vsel %vm517, %v507, 0
  %521 = vmatprep.subr.mxu0 0.0
  %522 = vmatpush1.msra.mxu0 %v503
  %523 = vmatprep.subr.mxu0 0.0
  %524 = vmatpush1.msra.mxu0 %v504
  %525 = vmatprep.subr.mxu0 0.0
  %526 = vmatpush1.msra.mxu0 %v505
  %527 = vmatprep.subr.mxu0 0.0
  %528 = vmatpush1.msra.mxu0 %v506
  %529 = vmatprep.subr.mxu0 0.0
  %530 = vmatpush1.msra.mxu0 %v519
  %531 = vmatprep.subr.mxu0 0.0
  %532 = vmatpush1.msra.mxu0 0.0
  %533 = vmatprep.subr.mxu0 0.0
  %534 = vmatpush1.msra.mxu0 0.0
  %535 = vmatprep.subr.mxu0 0.0
  %536 = vmatpush1.msra.mxu0 0.0
  %537 = vmatprep.subr.mxu0 0.0
  %538 = vmatpush1.msra.mxu0 0.0
  %539 = vmatprep.subr.mxu0 0.0
  %540 = vmatpush1.msra.mxu0 0.0
  %541 = vmatprep.subr.mxu0 0.0
  %542 = vmatpush1.msra.mxu0 0.0
  %543 = vmatprep.subr.mxu0 0.0
  %544 = vmatpush1.msra.mxu0 0.0
  %545 = vmatprep.subr.mxu0 0.0
  %546 = vmatpush1.msra.mxu0 0.0
  %547 = vmatprep.subr.mxu0 0.0
  %548 = vmatpush1.msra.mxu0 0.0
  %549 = vmatprep.subr.mxu0 0.0
  %550 = vmatpush1.msra.mxu0 0.0
  %551 = vmatprep.subr.mxu0 0.0
  %552 = vmatpush1.msra.mxu0 0.0
  %553 = vmatprep.subr.mxu0 0.0
  %554 = vmatpush1.msra.mxu0 0.0
  %555 = vmatprep.subr.mxu0 0.0
  %556 = vmatpush1.msra.mxu0 0.0
  %557 = vmatprep.subr.mxu0 0.0
  %558 = vmatpush1.msra.mxu0 0.0
  %559 = vmatprep.subr.mxu0 0.0
  %560 = vmatpush1.msra.mxu0 0.0
  %561 = vmatprep.subr.mxu0 0.0
  %562 = vmatpush1.msra.mxu0 0.0
  %563 = vmatprep.subr.mxu0 0.0
  %564 = vmatpush1.msra.mxu0 0.0
  %565 = vmatprep.subr.mxu0 0.0
  %566 = vmatpush1.msra.mxu0 0.0
  %567 = vmatprep.subr.mxu0 0.0
  %568 = vmatpush1.msra.mxu0 0.0
  %569 = vmatprep.subr.mxu0 0.0
  %570 = vmatpush1.msra.mxu0 0.0
  %571 = vmatprep.subr.mxu0 0.0
  %572 = vmatpush1.msra.mxu0 0.0
  %573 = vmatprep.subr.mxu0 0.0
  %574 = vmatpush1.msra.mxu0 0.0
  %575 = vmatprep.subr.mxu0 0.0
  %576 = vmatpush1.msra.mxu0 0.0
  %577 = vmatprep.subr.mxu0 0.0
  %578 = vmatpush1.msra.mxu0 0.0
  %579 = vmatprep.subr.mxu0 0.0
  %580 = vmatpush1.msra.mxu0 0.0
  %581 = vmatprep.subr.mxu0 0.0
  %582 = vmatpush1.msra.mxu0 0.0
  %583 = vmatprep.subr.mxu0 0.0
  %584 = vmatpush1.msra.mxu0 0.0
  %585 = vmatprep.mubr.f32.mxu0 0.0
  %586 = vmatmul.mubr.f32.gmra.mrb[0].mxu0 %v515
  %v587 = vpop.f32.mrb[0].mxu0
  %v588 = vadd.f32 %v512, %v587
  %v589 = vpop.f32.mrb[0].mxu0
  %590 = vdwg.mxu0
  %v591 = vmul.f32 %v588, 0.5
  %v592 = vmul.f32 %v591, 1.442695
  %v593 = vpow.pop %v592
  %594 = vrot.lane.b32.xlu0 %v400, 8
  %v595 = vpop.permute.xlu0 %594
  %v597 = vmul.f32 %v593, %v595
  %v598 = vmul.f32 %v597, 0.1
  %600 = vrot.lane.b32.xlu0 %v598, 120
  %v601 = vpop.permute.xlu0 %600
  %v603 = vadd.f32 %v588, %v601
  %v604 = vld [vmem:[%s4 + $0x70] sm:$0xff]
  %v605 = vmul.f32 %v603, 0.2
  %v607 = vsel %vm408, %v604, 0
  %v610 = vsel %vm408, %v605, 0
  %612 = vmatprep.subr.mxu0 0.0
  %613 = vmatpush1.xpose.msra.mxu0 %v610
  %614 = vmatprep.subr.mxu0 0.0
  %615 = vmatpush1.xpose.msra.mxu0 0.0
  %616 = vmatprep.subr.mxu0 0.0
  %617 = vmatpush1.xpose.msra.mxu0 0.0
  %618 = vmatprep.subr.mxu0 0.0
  %619 = vmatpush1.xpose.msra.mxu0 0.0
  %620 = vmatprep.subr.mxu0 0.0
  %621 = vmatpush1.xpose.msra.mxu0 0.0
  %622 = vmatprep.subr.mxu0 0.0
  %623 = vmatpush1.xpose.msra.mxu0 0.0
  %624 = vmatprep.subr.mxu0 0.0
  %625 = vmatpush1.xpose.msra.mxu0 0.0
  %626 = vmatprep.subr.mxu0 0.0
  %627 = vmatpush1.xpose.msra.mxu0 0.0
  %628 = vmatprep.subr.mxu0 0.0
  %629 = vmatpush1.xpose.msra.mxu0 0.0
  %630 = vmatprep.subr.mxu0 0.0
  %631 = vmatpush1.xpose.msra.mxu0 0.0
  %632 = vmatprep.subr.mxu0 0.0
  %633 = vmatpush1.xpose.msra.mxu0 0.0
  %634 = vmatprep.subr.mxu0 0.0
  %635 = vmatpush1.xpose.msra.mxu0 0.0
  %636 = vmatprep.subr.mxu0 0.0
  %637 = vmatpush1.xpose.msra.mxu0 0.0
  %638 = vmatprep.subr.mxu0 0.0
  %639 = vmatpush1.xpose.msra.mxu0 0.0
  %640 = vmatprep.subr.mxu0 0.0
  %641 = vmatpush1.xpose.msra.mxu0 0.0
  %642 = vmatprep.subr.mxu0 0.0
  %643 = vmatpush1.xpose.msra.mxu0 0.0
  %644 = vmatprep.subr.mxu0 0.0
  %645 = vmatpush1.xpose.msra.mxu0 0.0
  %646 = vmatprep.subr.mxu0 0.0
  %647 = vmatpush1.xpose.msra.mxu0 0.0
  %648 = vmatprep.subr.mxu0 0.0
  %649 = vmatpush1.xpose.msra.mxu0 0.0
  %650 = vmatprep.subr.mxu0 0.0
  %651 = vmatpush1.xpose.msra.mxu0 0.0
  %652 = vmatprep.subr.mxu0 0.0
  %653 = vmatpush1.xpose.msra.mxu0 0.0
  %654 = vmatprep.subr.mxu0 0.0
  %655 = vmatpush1.xpose.msra.mxu0 0.0
  %656 = vmatprep.subr.mxu0 0.0
  %657 = vmatpush1.xpose.msra.mxu0 0.0
  %658 = vmatprep.subr.mxu0 0.0
  %659 = vmatpush1.xpose.msra.mxu0 0.0
  %660 = vmatprep.subr.mxu0 0.0
  %661 = vmatpush1.xpose.msra.mxu0 0.0
  %662 = vmatprep.subr.mxu0 0.0
  %663 = vmatpush1.xpose.msra.mxu0 0.0
  %664 = vmatprep.subr.mxu0 0.0
  %665 = vmatpush1.xpose.msra.mxu0 0.0
  %666 = vmatprep.subr.mxu0 0.0
  %667 = vmatpush1.xpose.msra.mxu0 0.0
  %668 = vmatprep.subr.mxu0 0.0
  %669 = vmatpush1.xpose.msra.mxu0 0.0
  %670 = vmatprep.subr.mxu0 0.0
  %671 = vmatpush1.xpose.msra.mxu0 0.0
  %672 = vmatprep.subr.mxu0 0.0
  %673 = vmatpush1.xpose.msra.mxu0 0.0
  %674 = vmatprep.subr.mxu0 0.0
  %675 = vmatpush1.xpose.msra.mxu0 0.0
  %676 = vmatprep.mubr.f32.mxu0 0.0
  %677 = vmatmul.mubr.f32.gmra.mrb[0].mxu0 %v607
  %v678 = vpop.f32.mrb[0].mxu0
  %v679 = vadd.f32 0.0, %v678
  %v680 = vpop.f32.mrb[0].mxu0
  %681 = vdwg.mxu0
  %v682 = vld [vmem:[%s3] sm:$0xff]
  %v683 = vld [vmem:[%s3 + $0x8] sm:$0xf]
  %v684 = vmul.f32 %v682, 0.8
  %v685 = vmul.f32 %v683, 0.8
  %v688 = vrot.slane %v684, 4
  %v689 = vrot.slane %v685, 4
  %v690 = vsel %vm32, %v688, %v689
  %v692 = vadd.f32 %v679, %v690
  %693 = vst.msk [vmem:[%s5] sm:$0xff] %vm28, %v692
  %s694 = scalar_lea.vmem %s3, 16
  %v695 = vld [vmem:[%s694] sm:$0xff]
  %v696 = vld [vmem:[%s694 + $0x8] sm:$0xf]
  %v697 = vmul.f32 %v695, 0.8
  %v698 = vmul.f32 %v696, 0.8
  %v701 = vrot.slane %v697, 4
  %v702 = vrot.slane %v698, 4
  %v703 = vsel %vm32, %v701, %v702
  %704 = vrot.lane.b32.xlu0 %v703, 4
  %v705 = vpop.permute.xlu0 %704
  %v707 = vadd.f32 %v679, %v705
  %709 = vrot.lane.b32.xlu0 %v707, 124
  %v710 = vpop.permute.xlu0 %709
  %s712 = scalar_lea.vmem %s5, 8
  %713 = vst.msk [vmem:[%s712] sm:$0xff] %vm28, %v710
  // Predicated region
  $region22: #{model_tail.1} parent=0 // pred_check
    _
  $region23: #{model_tail.1} parent=0 // pred_check_branch
    %715 = sbr.rel (0) target = $region25
  $region24: #{model_tail.1} parent=0 // pred_region
    _
  $region25: #{model_tail.1} parent=0 // pred_fallthru
    _
  // Predicated region
  $region26: #{model_tail.1} parent=0 // pred_check
    _
  $region27: #{model_tail.1} parent=0 // pred_check_branch
    %717 = sbr.rel (0) target = $region29
  $region28: #{model_tail.1} parent=0 // pred_region
    _
  $region29: #{model_tail.1} parent=0 // pred_fallthru
    _

</llo_original>
